<compile_context>
chip_gen: v7x
topology: tpu7x:2x2x1
jax: 0.10.0
libtpu: 0.0.40
codegen_flags: <defaults>
</compile_context>

<pallas_src>
import jax
import jax.numpy as jnp
from jax.experimental import pallas as pl
from jax.experimental.pallas import tpu as pltpu


def _identity_kernel(x_ref, o_ref):
    # Pure VMEM tile copy — no compute, only DMA in / full-lane vst out.
    o_ref[...] = x_ref[...]


_TARGET_TILE_BYTES = 4 << 20        # ~4 MiB per tile: >=85% HBM BW on v5e/v6e, amortizes
                                    # per-step overhead on v7x's ~3.2 TB/s HBM.
_SPLIT_THRESHOLD_BYTES = 512 << 10  # split 1-step grids above this so v7x uses both TCs
_VMEM_LIMIT_BYTES = 48 << 20        # v5e scoped default (16 MiB) exactly equals the
                                    # double-buffered footprint; grant headroom explicitly.


def identity_1d_forward(x):
    """Pallas identity: returns a tensor equal to `x` (same shape & dtype).

    The module's __init__ takes `k` but defines no parameters, so there is
    nothing to initialize.
    """
    orig_shape = x.shape
    n = int(x.size)
    if n == 0:
        return x

    itemsize = jnp.dtype(x.dtype).itemsize
    flat = x.reshape(-1)

    # Lane-dense width (multiple of 128).  Prefer one that divides n exactly
    # so no wrapper-side pad/slice (each a full extra HBM pass) is needed.
    width = None
    for cand in (512, 256, 128):
        if n % cand == 0:
            width = cand
            break

    pad = 0
    if width is None:
        # Misaligned element count: minimal pad to the next multiple of 128
        # (< 128 extra elements).  Only shapes with n % 128 != 0 pay for this.
        width = 128
        rows = -(-n // width)
        pad = rows * width - n
        flat = jnp.pad(flat, (0, pad))
    else:
        rows = n // width

    # Sublane granularity per dtype: 8 (4-byte), 16 (2-byte), 32 (1-byte).
    sub = max(8, 8 * (4 // max(1, itemsize)))

    # Constant-byte tile (~4 MiB) independent of width / dtype.
    tile_rows = max(sub, (_TARGET_TILE_BYTES // (width * itemsize)) // sub * sub)

    slab_bytes = rows * width * itemsize
    if rows <= tile_rows:
        if slab_bytes > _SPLIT_THRESHOLD_BYTES and rows >= 2 * sub:
            # Medium slab: split into 2 row-blocks so both v7x TensorCores run.
            tile_rows = ((-(-rows // 2)) + sub - 1) // sub * sub
        else:
            # Small slab: single block == full array shape (always layout-legal).
            tile_rows = rows

    x2d = flat.reshape(rows, width)
    grid = (pl.cdiv(rows, tile_rows),)  # ragged last block is masked by Pallas

    out2d = pl.pallas_call(
        _identity_kernel,
        out_shape=jax.ShapeDtypeStruct((rows, width), x.dtype),
        grid=grid,
        in_specs=[pl.BlockSpec((tile_rows, width), lambda i: (i, 0))],
        out_specs=pl.BlockSpec((tile_rows, width), lambda i: (i, 0)),
        compiler_params=pltpu.CompilerParams(
            dimension_semantics=("parallel",),
            vmem_limit_bytes=_VMEM_LIMIT_BYTES,
        ),
        cost_estimate=pl.CostEstimate(
            flops=0,
            transcendentals=0,
            bytes_accessed=2 * rows * width * itemsize,
        ),
    )(x2d)

    out_flat = out2d.reshape(-1)
    if pad:
        out_flat = out_flat[:n]
    return out_flat.reshape(orig_shape)
    # TODO(synk): if the caller can donate x, alias input->output
    # (input_output_aliases={0: 0}) and skip the copy entirely.


if __name__ == "__main__":
    key = jax.random.PRNGKey(0)
    # Small 1D-signal-style input: batch=2, channels=4, length=16.
    x = jax.random.normal(key, (2, 4, 16), dtype=jnp.float32)

    y = identity_1d_forward(x)
    jax.block_until_ready(y)

    assert y.shape == x.shape and y.dtype == x.dtype
    assert bool(jnp.all(y == x))
    print("KERNEL_OK")
</pallas_src>

<mosaic_0001>
module attributes {stable_mosaic.version = 11 : i64} {
  func.func @_identity_kernel(%arg0: i32, %arg1: memref<1x128xf32, #tpu.memory_space<vmem>>, %arg2: memref<1x128xf32, #tpu.memory_space<vmem>>) attributes {dimension_semantics = [#tpu.dimension_semantics<parallel>], iteration_bounds = array<i64: 1>, scalar_prefetch = 0 : i64, scratch_operands = 0 : i64, tpu.core_type = #tpu.core_type<tc>, window_params = [{transform_indices = @transform_0, window_bounds = array<i64: 1, 128>}, {transform_indices = @transform_1, window_bounds = array<i64: 1, 128>}]} {
    %c0 = arith.constant 0 : index
    %c0_0 = arith.constant 0 : index
    %0 = vector.load %arg1[%c0, %c0_0] : memref<1x128xf32, #tpu.memory_space<vmem>>, vector<1x128xf32>
    %c0_1 = arith.constant 0 : index
    %c0_2 = arith.constant 0 : index
    %1 = vector.load %arg2[%c0_1, %c0_2] : memref<1x128xf32, #tpu.memory_space<vmem>>, vector<1x128xf32>
    tpu.vector_store %arg2[%c0_1, %c0_2], %0 {strides = array<i32>} : memref<1x128xf32, #tpu.memory_space<vmem>>, vector<1x128xf32>,
    return
  }
  func.func @transform_0(%arg0: i32) -> (i32, i32) {
    %c0_i32 = arith.constant 0 : i32
    %c0_i32_0 = arith.constant 0 : i32
    return %arg0, %c0_i32 : i32, i32
  }
  func.func @transform_1(%arg0: i32) -> (i32, i32) {
    %c0_i32 = arith.constant 0 : i32
    %c0_i32_0 = arith.constant 0 : i32
    return %arg0, %c0_i32 : i32, i32
  }
}

</mosaic_0001>

<llo_original>
// kernel: tpu_custom_call.1
$region0: #{tpu_custom_call.1}
  #allocation0 [shape = 'u32[]', space=smem, size = 0x4, offset = 0x4, fixed_abs, tag = 'smem constant byte address 0x4 - core index']
  #allocation1 [shape = 'u32[144,128]{1,0:T(1,128)}', space=vmem, size = 0x12000, scoped, tag = 'internal scratch']
  %s0 = inlined_call_operand.hbm [shape: f32[1,128], index: 0, kind: input, shape index: {}]
  %s1 = inlined_call_operand.hbm [shape: f32[1,128], index: 1, kind: output, shape index: {}]
  %s2 = sld [smem:[#allocation0]]
  $region18: #{tpu_custom_call.1} parent=0
    _
  %s4 = ssub.s32 1, %s2
  %s5 = scalar_select 0, %s4, %s2
  $region1: #{tpu_custom_call.1} parent=0
    #allocation2 [shape = 'u8[512]{0}', space=vmem, size = 0x400, scoped, tag = 'input window, operand 0, single buffered']
    #allocation3 [shape = 's32[1]{0}', space=sflag, size = 0x4, scoped, tag = 'scoped memory for tpu_custom_call.1']
    #allocation4 [shape = 's32[1]{0}', space=sflag, size = 0x4, scoped, tag = 'scoped memory for tpu_custom_call.1']
    #allocation5 [shape = 'u8[512]{0}', space=vmem, size = 0x400, scoped, tag = 'output window, operand 0, single buffered']
    %6 = vsyncpa [#allocation3], 0
    %7 = vsyncpa [#allocation4], 0
    // Predicated region
    $region2: #{tpu_custom_call.1} parent=1 // pred_check
      _
    $region3: #{tpu_custom_call.1} parent=1 // pred_check_branch
      %9 = sbr.rel (0) target = $region5
    $region4: #{tpu_custom_call.1} parent=1 // pred_region
      %s11 = ssub.s32 16, 16
      %12 = vsyncadd [#allocation3], %s11
      %s14 = sshll.u32 [#allocation2], 4
      %s15 = int_to_ptr.vmem [resolvable:$true] %s14
      %17 = dma.hbm_to_vmem [thread:$0]  %s0, 16, %s15, [#allocation3]
    $region5: #{tpu_custom_call.1} parent=1 // pred_fallthru
      _
    // Predicated region
    $region6: #{tpu_custom_call.1} parent=1 // pred_check
      _
    $region7: #{tpu_custom_call.1} parent=1 // pred_check_branch
      %19 = sbr.rel (0) target = $region9
    $region8: #{tpu_custom_call.1} parent=1 // pred_region
      %20 = dma.done [#allocation3], 16
    $region9: #{tpu_custom_call.1} parent=1 // pred_fallthru
      _
    %v21 = vld [vmem:[#allocation2] sm:$0x1]
    %22 = vst [vmem:[#allocation5] sm:$0x1] %v21
    // Predicated region
    $region10: #{tpu_custom_call.1} parent=1 // pred_check
      _
    $region11: #{tpu_custom_call.1} parent=1 // pred_check_branch
      %24 = sbr.rel (0) target = $region13
    $region12: #{tpu_custom_call.1} parent=1 // pred_region
      %s26 = ssub.s32 16, 16
      %27 = vsyncadd [#allocation4], %s26
      %s29 = sshll.u32 [#allocation5], 4
      %s30 = int_to_ptr.vmem [resolvable:$true] %s29
      %32 = dma.vmem_to_hbm [thread:$0]  %s30, 16, %s1, [#allocation4]
    $region13: #{tpu_custom_call.1} parent=1 // pred_fallthru
      _
    // Predicated region
    $region14: #{tpu_custom_call.1} parent=1 // pred_check
      _
    $region15: #{tpu_custom_call.1} parent=1 // pred_check_branch
      %34 = sbr.rel (0) target = $region17
    $region16: #{tpu_custom_call.1} parent=1 // pred_region
      %35 = dma.done [#allocation4], 16
    $region17: #{tpu_custom_call.1} parent=1 // pred_fallthru
      _
    %36 = vsyncpa [#allocation3], 1
    %37 = vsyncpa [#allocation4], 1

</llo_original>
